<compile_context>
chip_gen: v6e
topology: v6e:2x2x1
jax: 0.10.0
libtpu: 0.0.40
codegen_flags: <defaults>
</compile_context>

<pallas_src>
import jax
import jax.numpy as jnp
from jax.experimental import pallas as pl
from jax.experimental.pallas import tpu as pltpu


_LANE = 128                 # lane width: weight N is padded to this for a clean MXU tile
_TM_MAX = 1024              # max batch rows per grid step (mem-bound sweet spot)
_MXU_DTYPE = jnp.bfloat16   # MXU operand dtype; accumulation + epilogue stay f32


def _round_up(x, m):
    return ((x + m - 1) // m) * m


def _choose_tm(m):
    """Rows per grid step: exact block for tiny batches; otherwise split into
    >=2 steps (keeps both v7x TensorCores busy) capped at _TM_MAX."""
    if m <= 16:
        return m                                   # single block == full extent
    half = -(-m // 2)                              # ceil(m / 2)
    return min(_TM_MAX, _round_up(half, 8))


# ----------------------------- Pallas kernel ------------------------------- #

def _mlp_kernel(x_ref, wf_ref, bf_ref, o_ref):
    # Cast x f32 -> bf16 in VMEM (free VPU work; avoids a wrapper-side HBM copy).
    xb = x_ref[...].astype(wf_ref.dtype)
    # Folded 3-layer affine map: one MXU matmul with f32 accumulation.
    h = jnp.dot(xb, wf_ref[...], preferred_element_type=jnp.float32)
    n_out = o_ref.shape[-1]
    # Only the first dim_out lanes are real; add bias and store them directly.
    o_ref[...] = (h[:, :n_out] + bf_ref[...]).astype(o_ref.dtype)


# ------------------------------ wrappers ------------------------------------ #

def prepare_params(params):
    """One-time layout prep (outside the forward).

    Folds layer_input -> layer_hidden -> layer_output (no activations in the
    reference forward) into a single affine map:
        y = x @ Wf + bf,   Wf = W1^T W2^T W3^T,   bf = (b1 W2^T + b2) W3^T + b3
    Wf is zero-padded in N to a multiple of 128 (lane-dense MXU tile) and cast
    to bf16; bf stays f32 and unpadded (its width carries dim_out).
    """
    w1 = jnp.asarray(params["w1"], jnp.float32)    # (hidden, in)
    w2 = jnp.asarray(params["w2"], jnp.float32)    # (hidden, hidden)
    w3 = jnp.asarray(params["w3"], jnp.float32)    # (out, hidden)
    b1 = jnp.asarray(params["b1"], jnp.float32)
    b2 = jnp.asarray(params["b2"], jnp.float32)
    b3 = jnp.asarray(params["b3"], jnp.float32)

    wf = w1.T @ w2.T @ w3.T                        # (in, out), folded in f32
    bf = (b1 @ w2.T + b2) @ w3.T + b3              # (out,)

    dim_in, dim_out = wf.shape
    n_pad = _round_up(dim_out, _LANE)
    wf = jnp.pad(wf, ((0, 0), (0, n_pad - dim_out))).astype(_MXU_DTYPE)
    bf = bf.reshape(1, dim_out)                    # f32, unpadded
    return wf, bf


@jax.jit
def mlp_forward(x, wf, bf):
    """x: (B, C, H, W) f32 like the PyTorch module; returns (B, dim_out) f32."""
    # x.view(-1, C*H*W) — metadata-only reshape, no dtype cast in the wrapper.
    dim_in = x.shape[1] * x.shape[-2] * x.shape[-1]
    xf = x.reshape(-1, dim_in)
    m = xf.shape[0]
    n_pad = wf.shape[1]
    dim_out = bf.shape[1]

    tm = _choose_tm(m)
    grid = (pl.cdiv(m, tm),)                       # ragged last block is masked

    return pl.pallas_call(
        _mlp_kernel,
        out_shape=jax.ShapeDtypeStruct((m, dim_out), jnp.float32),
        grid=grid,
        in_specs=[
            pl.BlockSpec((tm, dim_in), lambda i: (i, 0)),     # x tile (pipelined)
            pl.BlockSpec((dim_in, n_pad), lambda i: (0, 0)),  # resident folded weight
            pl.BlockSpec((1, dim_out), lambda i: (0, 0)),     # resident folded bias
        ],
        out_specs=pl.BlockSpec((tm, dim_out), lambda i: (i, 0)),
        compiler_params=pltpu.CompilerParams(
            dimension_semantics=("parallel",),
        ),
    )(xf, wf, bf)


# ----------------------- reference + init (for testing) --------------------- #

def init_params(key, dim_in, dim_hidden, dim_out):
    """PyTorch-style nn.Linear init: weight (out, in), uniform(+-1/sqrt(fan_in))."""
    ks = jax.random.split(key, 6)

    def u(k, shape, fan_in):
        bound = 1.0 / float(fan_in) ** 0.5
        return jax.random.uniform(k, shape, jnp.float32, -bound, bound)

    return {
        "w1": u(ks[0], (dim_hidden, dim_in), dim_in),
        "b1": u(ks[1], (dim_hidden,), dim_in),
        "w2": u(ks[2], (dim_hidden, dim_hidden), dim_hidden),
        "b2": u(ks[3], (dim_hidden,), dim_hidden),
        "w3": u(ks[4], (dim_out, dim_hidden), dim_hidden),
        "b3": u(ks[5], (dim_out,), dim_hidden),
    }


def mlp_reference(x, params):
    dim_in = x.shape[1] * x.shape[-2] * x.shape[-1]
    h = x.reshape(-1, dim_in)
    h = h @ params["w1"].T + params["b1"]
    h = h @ params["w2"].T + params["b2"]
    return h @ params["w3"].T + params["b3"]


if __name__ == "__main__":
    key = jax.random.PRNGKey(0)
    k_x, k_p = jax.random.split(key)

    batch, channels, spatial = 2, 4, 16
    dim_in = channels * spatial * spatial            # 1024
    dim_hidden, dim_out = 32, 10

    x = jax.random.normal(k_x, (batch, channels, spatial, spatial), jnp.float32)
    params = init_params(k_p, dim_in, dim_hidden, dim_out)

    wf, bf = prepare_params(params)
    out = mlp_forward(x, wf, bf)
    jax.block_until_ready(out)

    assert out.shape == (batch, dim_out) and out.dtype == jnp.float32
    ref = mlp_reference(x, params)
    max_err = float(jnp.max(jnp.abs(out - ref)))
    assert max_err < 1e-1, f"max abs err vs f32 reference: {max_err}"
    print("KERNEL_OK")
</pallas_src>

<mosaic_0001>
module attributes {stable_mosaic.version = 11 : i64} {
  func.func @_mlp_kernel(%arg0: i32, %arg1: memref<2x1024xf32, #tpu.memory_space<vmem>>, %arg2: memref<1024x128xbf16, #tpu.memory_space<vmem>>, %arg3: memref<1x10xf32, #tpu.memory_space<vmem>>, %arg4: memref<2x10xf32, #tpu.memory_space<vmem>>) attributes {dimension_semantics = [#tpu.dimension_semantics<parallel>], iteration_bounds = array<i64: 1>, scalar_prefetch = 0 : i64, scratch_operands = 0 : i64, tpu.core_type = #tpu.core_type<tc>, window_params = [{transform_indices = @transform_0, window_bounds = array<i64: 2, 1024>}, {pipeline_mode = #tpu.pipeline_mode<synchronous>, transform_indices = @transform_1, window_bounds = array<i64: 1024, 128>}, {pipeline_mode = #tpu.pipeline_mode<synchronous>, transform_indices = @transform_2, window_bounds = array<i64: 1, 10>}, {transform_indices = @transform_3, window_bounds = array<i64: 2, 10>}]} {
    %c0 = arith.constant 0 : index
    %c0_0 = arith.constant 0 : index
    %0 = vector.load %arg1[%c0, %c0_0] : memref<2x1024xf32, #tpu.memory_space<vmem>>, vector<2x1024xf32>
    %1 = arith.truncf %0 : vector<2x1024xf32> to vector<2x1024xbf16>
    %c0_1 = arith.constant 0 : index
    %c0_2 = arith.constant 0 : index
    %2 = vector.load %arg2[%c0_1, %c0_2] : memref<1024x128xbf16, #tpu.memory_space<vmem>>, vector<1024x128xbf16>
    %cst = arith.constant dense<0.000000e+00> : vector<2x128xf32>
    %3 = tpu.matmul %1, %2, %cst {dimension_numbers = #tpu.dot_dimension_numbers<[1], [0], [0], [1], [0, 0, 1, 1], [], []>} : vector<2x1024xbf16>, vector<1024x128xbf16>, vector<2x128xf32> -> vector<2x128xf32>
    %4 = vector.extract_strided_slice %3 {offsets = [0, 0], sizes = [2, 10], strides = [1, 1]} : vector<2x128xf32> to vector<2x10xf32>
    %c0_3 = arith.constant 0 : index
    %c0_4 = arith.constant 0 : index
    %5 = vector.load %arg3[%c0_3, %c0_4] : memref<1x10xf32, #tpu.memory_space<vmem>>, vector<1x10xf32>
    %6 = vector.broadcast %5 : vector<1x10xf32> to vector<2x10xf32>
    %7 = arith.addf %4, %6 : vector<2x10xf32>
    %c0_5 = arith.constant 0 : index
    %c0_6 = arith.constant 0 : index
    %8 = vector.load %arg4[%c0_5, %c0_6] : memref<2x10xf32, #tpu.memory_space<vmem>>, vector<2x10xf32>
    tpu.vector_store %arg4[%c0_5, %c0_6], %7 {strides = array<i32>} : memref<2x10xf32, #tpu.memory_space<vmem>>, vector<2x10xf32>,
    return
  }
  func.func @transform_0(%arg0: i32) -> (i32, i32) {
    %c0_i32 = arith.constant 0 : i32
    %c0_i32_0 = arith.constant 0 : i32
    return %arg0, %c0_i32 : i32, i32
  }
  func.func @transform_1(%arg0: i32) -> (i32, i32) {
    %c0_i32 = arith.constant 0 : i32
    %c0_i32_0 = arith.constant 0 : i32
    %c0_i32_1 = arith.constant 0 : i32
    return %c0_i32, %c0_i32_0 : i32, i32
  }
  func.func @transform_2(%arg0: i32) -> (i32, i32) {
    %c0_i32 = arith.constant 0 : i32
    %c0_i32_0 = arith.constant 0 : i32
    %c0_i32_1 = arith.constant 0 : i32
    return %c0_i32, %c0_i32_0 : i32, i32
  }
  func.func @transform_3(%arg0: i32) -> (i32, i32) {
    %c0_i32 = arith.constant 0 : i32
    %c0_i32_0 = arith.constant 0 : i32
    return %arg0, %c0_i32 : i32, i32
  }
}

</mosaic_0001>

<llo_original>
// kernel: mlp_forward.1
$region0: #{mlp_forward.1}
  #allocation0 [shape = 'u32[]', space=smem, size = 0x4, offset = 0x4, fixed_abs, tag = 'smem constant byte address 0x4 - core index']
  #allocation1 [shape = 'u32[144,128]{1,0:T(1,128)}', space=vmem, size = 0x12000, scoped, tag = 'internal scratch']
  %s0 = inlined_call_operand.vmem [shape: f32[2,1024], index: 0, kind: input, shape index: {}]
  %s1 = inlined_call_operand.hbm [shape: bf16[1024,128], index: 1, kind: input, shape index: {}]
  %s2 = inlined_call_operand.vmem [shape: f32[1,10], index: 2, kind: input, shape index: {}]
  %s3 = inlined_call_operand.hbm [shape: f32[2,10], index: 3, kind: output, shape index: {}]
  %s4 = sld [smem:[#allocation0]]
  $region26: #{mlp_forward.1} parent=0
    _
  %s6 = ssub.s32 1, %s4
  %s7 = scalar_select 0, %s6, %s4
  $region1: #{mlp_forward.1} parent=0
    #allocation2 [shape = 'u8[262144]{0}', space=vmem, size = 0x40000, scoped, tag = 'input window, operand 1, single buffered']
    #allocation3 [shape = 's32[1]{0}', space=sflag, size = 0x4, scoped, tag = 'scoped memory for mlp_forward.1']
    #allocation4 [shape = 's32[1]{0}', space=sflag, size = 0x4, scoped, tag = 'scoped memory for mlp_forward.1']
    #allocation5 [shape = 'u8[1024]{0}', space=vmem, size = 0x400, scoped, tag = 'output window, operand 0, single buffered']
    %8 = vsyncpa [#allocation3], 0
    %9 = vsyncpa [#allocation4], 0
    // Predicated region
    $region2: #{mlp_forward.1} parent=1 // pred_check
      _
    $region3: #{mlp_forward.1} parent=1 // pred_check_branch
      %11 = sbr.rel (0) target = $region5
    $region4: #{mlp_forward.1} parent=1 // pred_region
      _
    $region5: #{mlp_forward.1} parent=1 // pred_fallthru
      _
    // Predicated region
    $region6: #{mlp_forward.1} parent=1 // pred_check
      _
    $region7: #{mlp_forward.1} parent=1 // pred_check_branch
      %13 = sbr.rel (0) target = $region9
    $region8: #{mlp_forward.1} parent=1 // pred_region
      %s15 = ssub.s32 8192, 8192
      %16 = vsyncadd [#allocation3], %s15
      %s17 = sshll.u32 [#allocation2], 4
      %s18 = int_to_ptr.vmem [resolvable:$true] %s17
      %23 = dma.hbm_to_vmem [thread:$0]  %s1, 8192, %s18, [#allocation3], 64, 64, 4
    $region9: #{mlp_forward.1} parent=1 // pred_fallthru
      _
    // Predicated region
    $region10: #{mlp_forward.1} parent=1 // pred_check
      _
    $region11: #{mlp_forward.1} parent=1 // pred_check_branch
      %25 = sbr.rel (0) target = $region13
    $region12: #{mlp_forward.1} parent=1 // pred_region
      _
    $region13: #{mlp_forward.1} parent=1 // pred_fallthru
      _
    // Predicated region
    $region14: #{mlp_forward.1} parent=1 // pred_check
      _
    $region15: #{mlp_forward.1} parent=1 // pred_check_branch
      %27 = sbr.rel (0) target = $region17
    $region16: #{mlp_forward.1} parent=1 // pred_region
      %28 = dma.done [#allocation3], 8192
    $region17: #{mlp_forward.1} parent=1 // pred_fallthru
      _
    %v30 = vld [vmem:[%s0] sm:$0xff]
    %v31 = vld [vmem:[%s0 + $0x8] sm:$0xff]
    %v34 = vcombine.high %v30, %v30
    %v36 = vunpack.c.l.s4 1983009808
    %v37 = vunpack.c.0.s8 %v36
    %v38 = vlaneseq
    %v39 = vshrl.u32 %v38, 7
    %v40 = vsub.s32 %v37, %v39
    %v41 = vrot.slane %v30, %v40
    %v43 = vunpack.c.l.s4 1983009808
    %v44 = vunpack.c.0.s8 %v43
    %v45 = vlaneseq
    %v46 = vshrl.u32 %v45, 7
    %v47 = vsub.s32 %v44, %v46
    %v48 = vrot.slane %v34, %v47
    %v49 = vcombine.high %v41, %v41
    %v50 = vcombine.high %v48, %v48
    %v51 = vcombine.high %v31, %v31
    %v53 = vunpack.c.l.s4 1983009808
    %v54 = vunpack.c.0.s8 %v53
    %v55 = vlaneseq
    %v56 = vshrl.u32 %v55, 7
    %v57 = vsub.s32 %v54, %v56
    %v58 = vrot.slane %v31, %v57
    %v60 = vunpack.c.l.s4 1983009808
    %v61 = vunpack.c.0.s8 %v60
    %v62 = vlaneseq
    %v63 = vshrl.u32 %v62, 7
    %v64 = vsub.s32 %v61, %v63
    %v65 = vrot.slane %v51, %v64
    %v66 = vcombine.high %v58, %v58
    %v67 = vcombine.high %v65, %v65
    %v76 = vpack.c.bf16 %v41, %v41
    %v77 = vpack.c.bf16 %v49, %v49
    %v78 = vpack.c.bf16 %v48, %v48
    %v79 = vpack.c.bf16 %v50, %v50
    %v80 = vpack.c.bf16 %v58, %v58
    %v81 = vpack.c.bf16 %v66, %v66
    %v82 = vpack.c.bf16 %v65, %v65
    %v83 = vpack.c.bf16 %v67, %v67
    %v84 = vld [vmem:[#allocation2] sm:$0xf]
    %v85 = vld [vmem:[#allocation2 + $0x4] sm:$0xf]
    %v86 = vld [vmem:[#allocation2 + $0x8] sm:$0xf]
    %v87 = vld [vmem:[#allocation2 + $0xc] sm:$0xf]
    %v88 = vld [vmem:[#allocation2 + $0x10] sm:$0xf]
    %v89 = vld [vmem:[#allocation2 + $0x14] sm:$0xf]
    %v90 = vld [vmem:[#allocation2 + $0x18] sm:$0xf]
    %v91 = vld [vmem:[#allocation2 + $0x1c] sm:$0xf]
    %v92 = vld [vmem:[#allocation2 + $0x20] sm:$0xf]
    %v93 = vld [vmem:[#allocation2 + $0x24] sm:$0xf]
    %v94 = vld [vmem:[#allocation2 + $0x28] sm:$0xf]
    %v95 = vld [vmem:[#allocation2 + $0x2c] sm:$0xf]
    %v96 = vld [vmem:[#allocation2 + $0x30] sm:$0xf]
    %v97 = vld [vmem:[#allocation2 + $0x34] sm:$0xf]
    %v98 = vld [vmem:[#allocation2 + $0x38] sm:$0xf]
    %v99 = vld [vmem:[#allocation2 + $0x3c] sm:$0xf]
    %v100 = vld [vmem:[#allocation2 + $0x40] sm:$0xf]
    %v101 = vld [vmem:[#allocation2 + $0x44] sm:$0xf]
    %v102 = vld [vmem:[#allocation2 + $0x48] sm:$0xf]
    %v103 = vld [vmem:[#allocation2 + $0x4c] sm:$0xf]
    %v104 = vld [vmem:[#allocation2 + $0x50] sm:$0xf]
    %v105 = vld [vmem:[#allocation2 + $0x54] sm:$0xf]
    %v106 = vld [vmem:[#allocation2 + $0x58] sm:$0xf]
    %v107 = vld [vmem:[#allocation2 + $0x5c] sm:$0xf]
    %v108 = vld [vmem:[#allocation2 + $0x60] sm:$0xf]
    %v109 = vld [vmem:[#allocation2 + $0x64] sm:$0xf]
    %v110 = vld [vmem:[#allocation2 + $0x68] sm:$0xf]
    %v111 = vld [vmem:[#allocation2 + $0x6c] sm:$0xf]
    %v112 = vld [vmem:[#allocation2 + $0x70] sm:$0xf]
    %v113 = vld [vmem:[#allocation2 + $0x74] sm:$0xf]
    %v114 = vld [vmem:[#allocation2 + $0x78] sm:$0xf]
    %v115 = vld [vmem:[#allocation2 + $0x7c] sm:$0xf]
    %v116 = vld [vmem:[#allocation2 + $0x80] sm:$0xf]
    %v117 = vld [vmem:[#allocation2 + $0x84] sm:$0xf]
    %v118 = vld [vmem:[#allocation2 + $0x88] sm:$0xf]
    %v119 = vld [vmem:[#allocation2 + $0x8c] sm:$0xf]
    %v120 = vld [vmem:[#allocation2 + $0x90] sm:$0xf]
    %v121 = vld [vmem:[#allocation2 + $0x94] sm:$0xf]
    %v122 = vld [vmem:[#allocation2 + $0x98] sm:$0xf]
    %v123 = vld [vmem:[#allocation2 + $0x9c] sm:$0xf]
    %v124 = vld [vmem:[#allocation2 + $0xa0] sm:$0xf]
    %v125 = vld [vmem:[#allocation2 + $0xa4] sm:$0xf]
    %v126 = vld [vmem:[#allocation2 + $0xa8] sm:$0xf]
    %v127 = vld [vmem:[#allocation2 + $0xac] sm:$0xf]
    %v128 = vld [vmem:[#allocation2 + $0xb0] sm:$0xf]
    %v129 = vld [vmem:[#allocation2 + $0xb4] sm:$0xf]
    %v130 = vld [vmem:[#allocation2 + $0xb8] sm:$0xf]
    %v131 = vld [vmem:[#allocation2 + $0xbc] sm:$0xf]
    %v132 = vld [vmem:[#allocation2 + $0xc0] sm:$0xf]
    %v133 = vld [vmem:[#allocation2 + $0xc4] sm:$0xf]
    %v134 = vld [vmem:[#allocation2 + $0xc8] sm:$0xf]
    %v135 = vld [vmem:[#allocation2 + $0xcc] sm:$0xf]
    %v136 = vld [vmem:[#allocation2 + $0xd0] sm:$0xf]
    %v137 = vld [vmem:[#allocation2 + $0xd4] sm:$0xf]
    %v138 = vld [vmem:[#allocation2 + $0xd8] sm:$0xf]
    %v139 = vld [vmem:[#allocation2 + $0xdc] sm:$0xf]
    %v140 = vld [vmem:[#allocation2 + $0xe0] sm:$0xf]
    %v141 = vld [vmem:[#allocation2 + $0xe4] sm:$0xf]
    %v142 = vld [vmem:[#allocation2 + $0xe8] sm:$0xf]
    %v143 = vld [vmem:[#allocation2 + $0xec] sm:$0xf]
    %v144 = vld [vmem:[#allocation2 + $0xf0] sm:$0xf]
    %v145 = vld [vmem:[#allocation2 + $0xf4] sm:$0xf]
    %v146 = vld [vmem:[#allocation2 + $0xf8] sm:$0xf]
    %v147 = vld [vmem:[#allocation2 + $0xfc] sm:$0xf]
    %v148 = vld [vmem:[#allocation2 + $0x100] sm:$0xf]
    %v149 = vld [vmem:[#allocation2 + $0x104] sm:$0xf]
    %v150 = vld [vmem:[#allocation2 + $0x108] sm:$0xf]
    %v151 = vld [vmem:[#allocation2 + $0x10c] sm:$0xf]
    %v152 = vld [vmem:[#allocation2 + $0x110] sm:$0xf]
    %v153 = vld [vmem:[#allocation2 + $0x114] sm:$0xf]
    %v154 = vld [vmem:[#allocation2 + $0x118] sm:$0xf]
    %v155 = vld [vmem:[#allocation2 + $0x11c] sm:$0xf]
    %v156 = vld [vmem:[#allocation2 + $0x120] sm:$0xf]
    %v157 = vld [vmem:[#allocation2 + $0x124] sm:$0xf]
    %v158 = vld [vmem:[#allocation2 + $0x128] sm:$0xf]
    %v159 = vld [vmem:[#allocation2 + $0x12c] sm:$0xf]
    %v160 = vld [vmem:[#allocation2 + $0x130] sm:$0xf]
    %v161 = vld [vmem:[#allocation2 + $0x134] sm:$0xf]
    %v162 = vld [vmem:[#allocation2 + $0x138] sm:$0xf]
    %v163 = vld [vmem:[#allocation2 + $0x13c] sm:$0xf]
    %v164 = vld [vmem:[#allocation2 + $0x140] sm:$0xf]
    %v165 = vld [vmem:[#allocation2 + $0x144] sm:$0xf]
    %v166 = vld [vmem:[#allocation2 + $0x148] sm:$0xf]
    %v167 = vld [vmem:[#allocation2 + $0x14c] sm:$0xf]
    %v168 = vld [vmem:[#allocation2 + $0x150] sm:$0xf]
    %v169 = vld [vmem:[#allocation2 + $0x154] sm:$0xf]
    %v170 = vld [vmem:[#allocation2 + $0x158] sm:$0xf]
    %v171 = vld [vmem:[#allocation2 + $0x15c] sm:$0xf]
    %v172 = vld [vmem:[#allocation2 + $0x160] sm:$0xf]
    %v173 = vld [vmem:[#allocation2 + $0x164] sm:$0xf]
    %v174 = vld [vmem:[#allocation2 + $0x168] sm:$0xf]
    %v175 = vld [vmem:[#allocation2 + $0x16c] sm:$0xf]
    %v176 = vld [vmem:[#allocation2 + $0x170] sm:$0xf]
    %v177 = vld [vmem:[#allocation2 + $0x174] sm:$0xf]
    %v178 = vld [vmem:[#allocation2 + $0x178] sm:$0xf]
    %v179 = vld [vmem:[#allocation2 + $0x17c] sm:$0xf]
    %v180 = vld [vmem:[#allocation2 + $0x180] sm:$0xf]
    %v181 = vld [vmem:[#allocation2 + $0x184] sm:$0xf]
    %v182 = vld [vmem:[#allocation2 + $0x188] sm:$0xf]
    %v183 = vld [vmem:[#allocation2 + $0x18c] sm:$0xf]
    %v184 = vld [vmem:[#allocation2 + $0x190] sm:$0xf]
    %v185 = vld [vmem:[#allocation2 + $0x194] sm:$0xf]
    %v186 = vld [vmem:[#allocation2 + $0x198] sm:$0xf]
    %v187 = vld [vmem:[#allocation2 + $0x19c] sm:$0xf]
    %v188 = vld [vmem:[#allocation2 + $0x1a0] sm:$0xf]
    %v189 = vld [vmem:[#allocation2 + $0x1a4] sm:$0xf]
    %v190 = vld [vmem:[#allocation2 + $0x1a8] sm:$0xf]
    %v191 = vld [vmem:[#allocation2 + $0x1ac] sm:$0xf]
    %v192 = vld [vmem:[#allocation2 + $0x1b0] sm:$0xf]
    %v193 = vld [vmem:[#allocation2 + $0x1b4] sm:$0xf]
    %v194 = vld [vmem:[#allocation2 + $0x1b8] sm:$0xf]
    %v195 = vld [vmem:[#allocation2 + $0x1bc] sm:$0xf]
    %v196 = vld [vmem:[#allocation2 + $0x1c0] sm:$0xf]
    %v197 = vld [vmem:[#allocation2 + $0x1c4] sm:$0xf]
    %v198 = vld [vmem:[#allocation2 + $0x1c8] sm:$0xf]
    %v199 = vld [vmem:[#allocation2 + $0x1cc] sm:$0xf]
    %v200 = vld [vmem:[#allocation2 + $0x1d0] sm:$0xf]
    %v201 = vld [vmem:[#allocation2 + $0x1d4] sm:$0xf]
    %v202 = vld [vmem:[#allocation2 + $0x1d8] sm:$0xf]
    %v203 = vld [vmem:[#allocation2 + $0x1dc] sm:$0xf]
    %v204 = vld [vmem:[#allocation2 + $0x1e0] sm:$0xf]
    %v205 = vld [vmem:[#allocation2 + $0x1e4] sm:$0xf]
    %v206 = vld [vmem:[#allocation2 + $0x1e8] sm:$0xf]
    %v207 = vld [vmem:[#allocation2 + $0x1ec] sm:$0xf]
    %v208 = vld [vmem:[#allocation2 + $0x1f0] sm:$0xf]
    %v209 = vld [vmem:[#allocation2 + $0x1f4] sm:$0xf]
    %v210 = vld [vmem:[#allocation2 + $0x1f8] sm:$0xf]
    %v211 = vld [vmem:[#allocation2 + $0x1fc] sm:$0xf]
    %v340 = vunpack.c.l.b16 %v84
    %v341 = vunpack.c.l.b16 %v85
    %v342 = vunpack.c.l.b16 %v86
    %v343 = vunpack.c.l.b16 %v87
    %v344 = vunpack.c.l.b16 %v88
    %v345 = vunpack.c.l.b16 %v89
    %v346 = vunpack.c.l.b16 %v90
    %v347 = vunpack.c.l.b16 %v91
    %v348 = vunpack.c.l.b16 %v92
    %v349 = vunpack.c.l.b16 %v93
    %v350 = vunpack.c.l.b16 %v94
    %v351 = vunpack.c.l.b16 %v95
    %v352 = vunpack.c.l.b16 %v96
    %v353 = vunpack.c.l.b16 %v97
    %v354 = vunpack.c.l.b16 %v98
    %v355 = vunpack.c.l.b16 %v99
    %v356 = vunpack.c.l.b16 %v100
    %v357 = vunpack.c.l.b16 %v101
    %v358 = vunpack.c.l.b16 %v102
    %v359 = vunpack.c.l.b16 %v103
    %v360 = vunpack.c.l.b16 %v104
    %v361 = vunpack.c.l.b16 %v105
    %v362 = vunpack.c.l.b16 %v106
    %v363 = vunpack.c.l.b16 %v107
    %v364 = vunpack.c.l.b16 %v108
    %v365 = vunpack.c.l.b16 %v109
    %v366 = vunpack.c.l.b16 %v110
    %v367 = vunpack.c.l.b16 %v111
    %v368 = vunpack.c.l.b16 %v112
    %v369 = vunpack.c.l.b16 %v113
    %v370 = vunpack.c.l.b16 %v114
    %v371 = vunpack.c.l.b16 %v115
    %v372 = vunpack.c.l.b16 %v116
    %v373 = vunpack.c.l.b16 %v117
    %v374 = vunpack.c.l.b16 %v118
    %v375 = vunpack.c.l.b16 %v119
    %v376 = vunpack.c.l.b16 %v120
    %v377 = vunpack.c.l.b16 %v121
    %v378 = vunpack.c.l.b16 %v122
    %v379 = vunpack.c.l.b16 %v123
    %v380 = vunpack.c.l.b16 %v124
    %v381 = vunpack.c.l.b16 %v125
    %v382 = vunpack.c.l.b16 %v126
    %v383 = vunpack.c.l.b16 %v127
    %v384 = vunpack.c.l.b16 %v128
    %v385 = vunpack.c.l.b16 %v129
    %v386 = vunpack.c.l.b16 %v130
    %v387 = vunpack.c.l.b16 %v131
    %v388 = vunpack.c.l.b16 %v132
    %v389 = vunpack.c.l.b16 %v133
    %v390 = vunpack.c.l.b16 %v134
    %v391 = vunpack.c.l.b16 %v135
    %v392 = vunpack.c.l.b16 %v136
    %v393 = vunpack.c.l.b16 %v137
    %v394 = vunpack.c.l.b16 %v138
    %v395 = vunpack.c.l.b16 %v139
    %v396 = vunpack.c.l.b16 %v140
    %v397 = vunpack.c.l.b16 %v141
    %v398 = vunpack.c.l.b16 %v142
    %v399 = vunpack.c.l.b16 %v143
    %v400 = vunpack.c.l.b16 %v144
    %v401 = vunpack.c.l.b16 %v145
    %v402 = vunpack.c.l.b16 %v146
    %v403 = vunpack.c.l.b16 %v147
    %v404 = vunpack.c.l.b16 %v148
    %v405 = vunpack.c.l.b16 %v149
    %v406 = vunpack.c.l.b16 %v150
    %v407 = vunpack.c.l.b16 %v151
    %v408 = vunpack.c.l.b16 %v152
    %v409 = vunpack.c.l.b16 %v153
    %v410 = vunpack.c.l.b16 %v154
    %v411 = vunpack.c.l.b16 %v155
    %v412 = vunpack.c.l.b16 %v156
    %v413 = vunpack.c.l.b16 %v157
    %v414 = vunpack.c.l.b16 %v158
    %v415 = vunpack.c.l.b16 %v159
    %v416 = vunpack.c.l.b16 %v160
    %v417 = vunpack.c.l.b16 %v161
    %v418 = vunpack.c.l.b16 %v162
    %v419 = vunpack.c.l.b16 %v163
    %v420 = vunpack.c.l.b16 %v164
    %v421 = vunpack.c.l.b16 %v165
    %v422 = vunpack.c.l.b16 %v166
    %v423 = vunpack.c.l.b16 %v167
    %v424 = vunpack.c.l.b16 %v168
    %v425 = vunpack.c.l.b16 %v169
    %v426 = vunpack.c.l.b16 %v170
    %v427 = vunpack.c.l.b16 %v171
    %v428 = vunpack.c.l.b16 %v172
    %v429 = vunpack.c.l.b16 %v173
    %v430 = vunpack.c.l.b16 %v174
    %v431 = vunpack.c.l.b16 %v175
    %v432 = vunpack.c.l.b16 %v176
    %v433 = vunpack.c.l.b16 %v177
    %v434 = vunpack.c.l.b16 %v178
    %v435 = vunpack.c.l.b16 %v179
    %v436 = vunpack.c.l.b16 %v180
    %v437 = vunpack.c.l.b16 %v181
    %v438 = vunpack.c.l.b16 %v182
    %v439 = vunpack.c.l.b16 %v183
    %v440 = vunpack.c.l.b16 %v184
    %v441 = vunpack.c.l.b16 %v185
    %v442 = vunpack.c.l.b16 %v186
    %v443 = vunpack.c.l.b16 %v187
    %v444 = vunpack.c.l.b16 %v188
    %v445 = vunpack.c.l.b16 %v189
    %v446 = vunpack.c.l.b16 %v190
    %v447 = vunpack.c.l.b16 %v191
    %v448 = vunpack.c.l.b16 %v192
    %v449 = vunpack.c.l.b16 %v193
    %v450 = vunpack.c.l.b16 %v194
    %v451 = vunpack.c.l.b16 %v195
    %v452 = vunpack.c.l.b16 %v196
    %v453 = vunpack.c.l.b16 %v197
    %v454 = vunpack.c.l.b16 %v198
    %v455 = vunpack.c.l.b16 %v199
    %v456 = vunpack.c.l.b16 %v200
    %v457 = vunpack.c.l.b16 %v201
    %v458 = vunpack.c.l.b16 %v202
    %v459 = vunpack.c.l.b16 %v203
    %v460 = vunpack.c.l.b16 %v204
    %v461 = vunpack.c.l.b16 %v205
    %v462 = vunpack.c.l.b16 %v206
    %v463 = vunpack.c.l.b16 %v207
    %v464 = vunpack.c.l.b16 %v208
    %v465 = vunpack.c.l.b16 %v209
    %v466 = vunpack.c.l.b16 %v210
    %v467 = vunpack.c.l.b16 %v211
    %v468 = vpack.c.b16 %v341, %v340
    %v469 = vpack.c.b16 %v343, %v342
    %v470 = vpack.c.b16 %v345, %v344
    %v471 = vpack.c.b16 %v347, %v346
    %v472 = vpack.c.b16 %v349, %v348
    %v473 = vpack.c.b16 %v351, %v350
    %v474 = vpack.c.b16 %v353, %v352
    %v475 = vpack.c.b16 %v355, %v354
    %v476 = vpack.c.b16 %v357, %v356
    %v477 = vpack.c.b16 %v359, %v358
    %v478 = vpack.c.b16 %v361, %v360
    %v479 = vpack.c.b16 %v363, %v362
    %v480 = vpack.c.b16 %v365, %v364
    %v481 = vpack.c.b16 %v367, %v366
    %v482 = vpack.c.b16 %v369, %v368
    %v483 = vpack.c.b16 %v371, %v370
    %v484 = vpack.c.b16 %v373, %v372
    %v485 = vpack.c.b16 %v375, %v374
    %v486 = vpack.c.b16 %v377, %v376
    %v487 = vpack.c.b16 %v379, %v378
    %v488 = vpack.c.b16 %v381, %v380
    %v489 = vpack.c.b16 %v383, %v382
    %v490 = vpack.c.b16 %v385, %v384
    %v491 = vpack.c.b16 %v387, %v386
    %v492 = vpack.c.b16 %v389, %v388
    %v493 = vpack.c.b16 %v391, %v390
    %v494 = vpack.c.b16 %v393, %v392
    %v495 = vpack.c.b16 %v395, %v394
    %v496 = vpack.c.b16 %v397, %v396
    %v497 = vpack.c.b16 %v399, %v398
    %v498 = vpack.c.b16 %v401, %v400
    %v499 = vpack.c.b16 %v403, %v402
    %v500 = vpack.c.b16 %v405, %v404
    %v501 = vpack.c.b16 %v407, %v406
    %v502 = vpack.c.b16 %v409, %v408
    %v503 = vpack.c.b16 %v411, %v410
    %v504 = vpack.c.b16 %v413, %v412
    %v505 = vpack.c.b16 %v415, %v414
    %v506 = vpack.c.b16 %v417, %v416
    %v507 = vpack.c.b16 %v419, %v418
    %v508 = vpack.c.b16 %v421, %v420
    %v509 = vpack.c.b16 %v423, %v422
    %v510 = vpack.c.b16 %v425, %v424
    %v511 = vpack.c.b16 %v427, %v426
    %v512 = vpack.c.b16 %v429, %v428
    %v513 = vpack.c.b16 %v431, %v430
    %v514 = vpack.c.b16 %v433, %v432
    %v515 = vpack.c.b16 %v435, %v434
    %v516 = vpack.c.b16 %v437, %v436
    %v517 = vpack.c.b16 %v439, %v438
    %v518 = vpack.c.b16 %v441, %v440
    %v519 = vpack.c.b16 %v443, %v442
    %v520 = vpack.c.b16 %v445, %v444
    %v521 = vpack.c.b16 %v447, %v446
    %v522 = vpack.c.b16 %v449, %v448
    %v523 = vpack.c.b16 %v451, %v450
    %v524 = vpack.c.b16 %v453, %v452
    %v525 = vpack.c.b16 %v455, %v454
    %v526 = vpack.c.b16 %v457, %v456
    %v527 = vpack.c.b16 %v459, %v458
    %v528 = vpack.c.b16 %v461, %v460
    %v529 = vpack.c.b16 %v463, %v462
    %v530 = vpack.c.b16 %v465, %v464
    %v531 = vpack.c.b16 %v467, %v466
    %596 = vmatprep.subr.bf16.mxu0 0
    %597 = vmatpush1.bf16.msra.mxu0 %v475
    %598 = vmatprep.subr.bf16.mxu0 0
    %599 = vmatpush1.bf16.msra.mxu0 %v474
    %600 = vmatprep.subr.bf16.mxu0 0
    %601 = vmatpush1.bf16.msra.mxu0 %v473
    %602 = vmatprep.subr.bf16.mxu0 0
    %603 = vmatpush1.bf16.msra.mxu0 %v472
    %604 = vmatprep.subr.bf16.mxu0 0
    %605 = vmatpush1.bf16.msra.mxu0 %v471
    %606 = vmatprep.subr.bf16.mxu0 0
    %607 = vmatpush1.bf16.msra.mxu0 %v470
    %608 = vmatprep.subr.bf16.mxu0 0
    %609 = vmatpush1.bf16.msra.mxu0 %v469
    %610 = vmatprep.subr.bf16.mxu0 0
    %611 = vmatpush1.bf16.msra.mxu0 %v468
    %612 = vmatprep.subr.bf16.mxu0 0
    %613 = vmatpush2.bf16.msra.mxu0 %v483
    %614 = vmatprep.subr.bf16.mxu0 0
    %615 = vmatpush2.bf16.msra.mxu0 %v482
    %616 = vmatprep.subr.bf16.mxu0 0
    %617 = vmatpush2.bf16.msra.mxu0 %v481
    %618 = vmatprep.subr.bf16.mxu0 0
    %619 = vmatpush2.bf16.msra.mxu0 %v480
    %620 = vmatprep.subr.bf16.mxu0 0
    %621 = vmatpush2.bf16.msra.mxu0 %v479
    %622 = vmatprep.subr.bf16.mxu0 0
    %623 = vmatpush2.bf16.msra.mxu0 %v478
    %624 = vmatprep.subr.bf16.mxu0 0
    %625 = vmatpush2.bf16.msra.mxu0 %v477
    %626 = vmatprep.subr.bf16.mxu0 0
    %627 = vmatpush2.bf16.msra.mxu0 %v476
    %628 = vmatprep.mubr.bf16.mxu0 %v77
    %629 = vmatmul.mubr.bf16.gmra.mxu0 %v76
    %v630 = vpop.f32.mrf.mxu0
    %v631 = vadd.f32 0.0, %v630
    %v632 = vpop.f32.mrf.mxu0
    %v633 = vpop.f32.mrf.mxu0
    %v634 = vpop.f32.mrf.mxu0
    %635 = vdwg.mxu0
    %636 = vmatprep.subr.bf16.mxu0 0
    %637 = vmatpush1.bf16.msra.mxu0 %v491
    %638 = vmatprep.subr.bf16.mxu0 0
    %639 = vmatpush1.bf16.msra.mxu0 %v490
    %640 = vmatprep.subr.bf16.mxu0 0
    %641 = vmatpush1.bf16.msra.mxu0 %v489
    %642 = vmatprep.subr.bf16.mxu0 0
    %643 = vmatpush1.bf16.msra.mxu0 %v488
    %644 = vmatprep.subr.bf16.mxu0 0
    %645 = vmatpush1.bf16.msra.mxu0 %v487
    %646 = vmatprep.subr.bf16.mxu0 0
    %647 = vmatpush1.bf16.msra.mxu0 %v486
    %648 = vmatprep.subr.bf16.mxu0 0
    %649 = vmatpush1.bf16.msra.mxu0 %v485
    %650 = vmatprep.subr.bf16.mxu0 0
    %651 = vmatpush1.bf16.msra.mxu0 %v484
    %652 = vmatprep.subr.bf16.mxu0 0
    %653 = vmatpush2.bf16.msra.mxu0 %v499
    %654 = vmatprep.subr.bf16.mxu0 0
    %655 = vmatpush2.bf16.msra.mxu0 %v498
    %656 = vmatprep.subr.bf16.mxu0 0
    %657 = vmatpush2.bf16.msra.mxu0 %v497
    %658 = vmatprep.subr.bf16.mxu0 0
    %659 = vmatpush2.bf16.msra.mxu0 %v496
    %660 = vmatprep.subr.bf16.mxu0 0
    %661 = vmatpush2.bf16.msra.mxu0 %v495
    %662 = vmatprep.subr.bf16.mxu0 0
    %663 = vmatpush2.bf16.msra.mxu0 %v494
    %664 = vmatprep.subr.bf16.mxu0 0
    %665 = vmatpush2.bf16.msra.mxu0 %v493
    %666 = vmatprep.subr.bf16.mxu0 0
    %667 = vmatpush2.bf16.msra.mxu0 %v492
    %668 = vmatprep.mubr.bf16.mxu0 %v79
    %669 = vmatmul.mubr.bf16.gmra.mxu0 %v78
    %v670 = vpop.f32.mrf.mxu0
    %v671 = vadd.f32 %v631, %v670
    %v672 = vpop.f32.mrf.mxu0
    %v673 = vpop.f32.mrf.mxu0
    %v674 = vpop.f32.mrf.mxu0
    %675 = vdwg.mxu0
    %676 = vmatprep.subr.bf16.mxu0 0
    %677 = vmatpush1.bf16.msra.mxu0 %v507
    %678 = vmatprep.subr.bf16.mxu0 0
    %679 = vmatpush1.bf16.msra.mxu0 %v506
    %680 = vmatprep.subr.bf16.mxu0 0
    %681 = vmatpush1.bf16.msra.mxu0 %v505
    %682 = vmatprep.subr.bf16.mxu0 0
    %683 = vmatpush1.bf16.msra.mxu0 %v504
    %684 = vmatprep.subr.bf16.mxu0 0
    %685 = vmatpush1.bf16.msra.mxu0 %v503
    %686 = vmatprep.subr.bf16.mxu0 0
    %687 = vmatpush1.bf16.msra.mxu0 %v502
    %688 = vmatprep.subr.bf16.mxu0 0
    %689 = vmatpush1.bf16.msra.mxu0 %v501
    %690 = vmatprep.subr.bf16.mxu0 0
    %691 = vmatpush1.bf16.msra.mxu0 %v500
    %692 = vmatprep.subr.bf16.mxu0 0
    %693 = vmatpush2.bf16.msra.mxu0 %v515
    %694 = vmatprep.subr.bf16.mxu0 0
    %695 = vmatpush2.bf16.msra.mxu0 %v514
    %696 = vmatprep.subr.bf16.mxu0 0
    %697 = vmatpush2.bf16.msra.mxu0 %v513
    %698 = vmatprep.subr.bf16.mxu0 0
    %699 = vmatpush2.bf16.msra.mxu0 %v512
    %700 = vmatprep.subr.bf16.mxu0 0
    %701 = vmatpush2.bf16.msra.mxu0 %v511
    %702 = vmatprep.subr.bf16.mxu0 0
    %703 = vmatpush2.bf16.msra.mxu0 %v510
    %704 = vmatprep.subr.bf16.mxu0 0
    %705 = vmatpush2.bf16.msra.mxu0 %v509
    %706 = vmatprep.subr.bf16.mxu0 0
    %707 = vmatpush2.bf16.msra.mxu0 %v508
    %708 = vmatprep.mubr.bf16.mxu0 %v81
    %709 = vmatmul.mubr.bf16.gmra.mxu0 %v80
    %v710 = vpop.f32.mrf.mxu0
    %v711 = vadd.f32 %v671, %v710
    %v712 = vpop.f32.mrf.mxu0
    %v713 = vpop.f32.mrf.mxu0
    %v714 = vpop.f32.mrf.mxu0
    %715 = vdwg.mxu0
    %716 = vmatprep.subr.bf16.mxu0 0
    %717 = vmatpush1.bf16.msra.mxu0 %v523
    %718 = vmatprep.subr.bf16.mxu0 0
    %719 = vmatpush1.bf16.msra.mxu0 %v522
    %720 = vmatprep.subr.bf16.mxu0 0
    %721 = vmatpush1.bf16.msra.mxu0 %v521
    %722 = vmatprep.subr.bf16.mxu0 0
    %723 = vmatpush1.bf16.msra.mxu0 %v520
    %724 = vmatprep.subr.bf16.mxu0 0
    %725 = vmatpush1.bf16.msra.mxu0 %v519
    %726 = vmatprep.subr.bf16.mxu0 0
    %727 = vmatpush1.bf16.msra.mxu0 %v518
    %728 = vmatprep.subr.bf16.mxu0 0
    %729 = vmatpush1.bf16.msra.mxu0 %v517
    %730 = vmatprep.subr.bf16.mxu0 0
    %731 = vmatpush1.bf16.msra.mxu0 %v516
    %732 = vmatprep.subr.bf16.mxu0 0
    %733 = vmatpush2.bf16.msra.mxu0 %v531
    %734 = vmatprep.subr.bf16.mxu0 0
    %735 = vmatpush2.bf16.msra.mxu0 %v530
    %736 = vmatprep.subr.bf16.mxu0 0
    %737 = vmatpush2.bf16.msra.mxu0 %v529
    %738 = vmatprep.subr.bf16.mxu0 0
    %739 = vmatpush2.bf16.msra.mxu0 %v528
    %740 = vmatprep.subr.bf16.mxu0 0
    %741 = vmatpush2.bf16.msra.mxu0 %v527
    %742 = vmatprep.subr.bf16.mxu0 0
    %743 = vmatpush2.bf16.msra.mxu0 %v526
    %744 = vmatprep.subr.bf16.mxu0 0
    %745 = vmatpush2.bf16.msra.mxu0 %v525
    %746 = vmatprep.subr.bf16.mxu0 0
    %747 = vmatpush2.bf16.msra.mxu0 %v524
    %748 = vmatprep.mubr.bf16.mxu0 %v83
    %749 = vmatmul.mubr.bf16.gmra.mxu0 %v82
    %v750 = vpop.f32.mrf.mxu0
    %v751 = vadd.f32 %v711, %v750
    %v752 = vpop.f32.mrf.mxu0
    %v753 = vpop.f32.mrf.mxu0
    %v754 = vpop.f32.mrf.mxu0
    %755 = vdwg.mxu0
    %v756 = vld [vmem:[%s2] sm:$0x1]
    %v758 = vlaneseq
    %v759 = vshrl.u32 %v758, 7
    %v760 = vsub.s32 0, %v759
    %v761 = vrot.slane %v756, %v760
    %v763 = vadd.f32 %v751, %v761
    %vm764 = vcmask 74752
    %765 = vst.msk [vmem:[#allocation5] sm:$0x3] %vm764, %v763
    // Predicated region
    $region18: #{mlp_forward.1} parent=1 // pred_check
      _
    $region19: #{mlp_forward.1} parent=1 // pred_check_branch
      %767 = sbr.rel (0) target = $region21
    $region20: #{mlp_forward.1} parent=1 // pred_region
      %s769 = ssub.s32 32, 32
      %770 = vsyncadd [#allocation4], %s769
      %s772 = sshll.u32 [#allocation5], 4
      %s773 = int_to_ptr.vmem [resolvable:$true] %s772
      %775 = dma.vmem_to_hbm [thread:$0]  %s773, 32, %s3, [#allocation4]
    $region21: #{mlp_forward.1} parent=1 // pred_fallthru
      _
    // Predicated region
    $region22: #{mlp_forward.1} parent=1 // pred_check
      _
    $region23: #{mlp_forward.1} parent=1 // pred_check_branch
      %777 = sbr.rel (0) target = $region25
    $region24: #{mlp_forward.1} parent=1 // pred_region
      %778 = dma.done [#allocation4], 32
    $region25: #{mlp_forward.1} parent=1 // pred_fallthru
      _
    %779 = vsyncpa [#allocation3], 1
    %780 = vsyncpa [#allocation4], 1

</llo_original>
